<compile_context>
chip_gen: v6e
topology: v6e:2x2x1
jax: 0.10.0
libtpu: 0.0.40
codegen_flags: <defaults>
</compile_context>

<pallas_src>
import math

import jax
import jax.numpy as jnp
from jax.experimental import pallas as pl
from jax.experimental.pallas import tpu as pltpu


# --------------------------------------------------------------------------
# PE buffer construction (matches torch's register_buffer 'pe' exactly)
# --------------------------------------------------------------------------
def make_pe(length, d_model):
    position = jnp.arange(length, dtype=jnp.float32)[:, None]                 # (L, 1)
    div_term = jnp.exp(
        jnp.arange(0, d_model, 2, dtype=jnp.float32) * (-math.log(10000.0) / d_model)
    )                                                                         # (D/2,)
    pe = jnp.zeros((length, d_model), jnp.float32)
    pe = pe.at[:, 0::2].set(jnp.sin(position * div_term))
    pe = pe.at[:, 1::2].set(jnp.cos(position * div_term))
    return pe                                                                 # (L, D)


# --------------------------------------------------------------------------
# Fused kernel: out = x + pe  (dropout in eval mode is identity)
# --------------------------------------------------------------------------
def _add_pe_kernel(x_ref, pe_ref, o_ref):
    # x_ref: (TB, TF), pe_ref: (1, TF) -> broadcast add, lane-dense store.
    o_ref[...] = x_ref[...] + pe_ref[...]


# --------------------------------------------------------------------------
# Byte-budgeted tile selection
# --------------------------------------------------------------------------
_TF_MAX = 16384                      # lanes per feature block (multiple of 128)
_BLOCK_BYTES = 3 * 1024 * 1024       # per x/out block; 4 double-buffered blocks
                                     # + PE tile stay well under 16 MiB


def _round_up(x, m):
    return ((x + m - 1) // m) * m


def _choose_tiles(B, F, itemsize):
    """Pick (TB, TF): lane-dense feature tile + multiple-of-8 batch tile."""
    # Feature tile: full row if it already fits the budget class, otherwise a
    # large multiple of 128 (unmasked vst, bounded VMEM independent of S*D).
    TF = F if F <= _TF_MAX else _TF_MAX

    # Batch tile from the byte budget (multiple of 8).
    elems = max(1, _BLOCK_BYTES // max(itemsize, 1))
    TB = max(8, (elems // max(TF, 1)) // 8 * 8)

    # v7x: keep >=2 batch grid steps when B is big enough so the "parallel"
    # annotation can actually shard work across both TensorCores.
    if B >= 16:
        TB = min(TB, _round_up(pl.cdiv(B, 2), 8))

    if TB >= B:
        TB = B                        # block == full dim is always legal
    return TB, TF


# --------------------------------------------------------------------------
# Forward
# --------------------------------------------------------------------------
def positional_encoding_forward(x, pe_buffer):
    """x: (B, S, D).  pe_buffer: (max_len, D) precomputed f32 table."""
    B, S, D = x.shape
    max_len = pe_buffer.shape[0]

    # Torch forward's dynamic-expansion branch (static decision under tracing).
    if S > max_len:
        pe = make_pe(S, D)
    else:
        pe = pe_buffer[:S]

    # Keep the add in x's dtype (cast PE once on the host side). For bf16 inputs
    # this differs from torch's f32-promoted add by <1 ulp of bf16.
    pe = pe.astype(x.dtype)

    # Lane-dense flattening: trailing dim is S*D, tiled in multiples of 128.
    F = S * D
    x2 = x.reshape(B, F)
    pe2 = pe.reshape(1, F)

    itemsize = jnp.dtype(x.dtype).itemsize
    TB, TF = _choose_tiles(B, F, itemsize)

    grid = (pl.cdiv(F, TF), pl.cdiv(B, TB))   # feature OUTER, batch inner:
                                              # PE block index constant across
                                              # consecutive (inner) steps -> PE
                                              # DMA'd once per feature block.

    out = pl.pallas_call(
        _add_pe_kernel,
        out_shape=jax.ShapeDtypeStruct((B, F), x.dtype),
        grid=grid,
        in_specs=[
            pl.BlockSpec((TB, TF), lambda f, b: (b, f)),
            pl.BlockSpec((1, TF), lambda f, b: (0, f)),
        ],
        out_specs=pl.BlockSpec((TB, TF), lambda f, b: (b, f)),
        compiler_params=pltpu.CompilerParams(
            # Pure elementwise: both axes independent -> shard over v7x's 2 TCs.
            dimension_semantics=("parallel", "parallel"),
            # Explicit, generation-portable scoped-VMEM limit (v5e default is
            # only 16 MiB; our 4 blocks + PE need ~12.2 MiB).
            vmem_limit_bytes=32 * 1024 * 1024,
        ),
        # NOTE: input_output_aliases={0: 0} would drop one HBM allocation, but
        # only if callers never reuse x after this op; left off to stay safe.
    )(x2, pe2)

    # TODO(synk): nn.Dropout(p=0.1) is modeled in eval mode (identity); a
    # training-mode dropout would use pltpu.prng_seed / pltpu.prng_random_bits
    # inside the same kernel.
    return out.reshape(B, S, D)


# --------------------------------------------------------------------------
# Module-style wrapper (mirrors the PyTorch class constructor)
# --------------------------------------------------------------------------
class PositionalEncoding:
    def __init__(self, d_model, max_len=500, dropout=0.1):
        self.d_model = d_model
        self.max_len = max_len
        self.pe = make_pe(max_len, d_model)   # registered-buffer equivalent

    def __call__(self, x):
        return positional_encoding_forward(x, self.pe)


if __name__ == "__main__":
    key = jax.random.PRNGKey(0)

    # Path 1: small demo shape, seq_len <= max_len (uses the registered buffer).
    B, S, D = 2, 8, 32
    x = jax.random.normal(key, (B, S, D), jnp.float32)
    mod = PositionalEncoding(d_model=D, max_len=500)
    out = jax.block_until_ready(mod(x))
    ref = x + mod.pe[None, :S, :]
    assert out.shape == (B, S, D)
    assert jnp.allclose(out, ref, atol=1e-6, rtol=1e-6)

    # Path 2: seq_len > max_len (exercises the dynamic-expansion branch).
    mod_small = PositionalEncoding(d_model=D, max_len=4)
    out2 = jax.block_until_ready(mod_small(x))
    ref2 = x + make_pe(S, D)[None, :, :]
    assert jnp.allclose(out2, ref2, atol=1e-6, rtol=1e-6)

    # Path 3: exercises cdiv grids / ragged batch tail / multi-step parallel grid
    # (B=24 with TB=16 -> 2 batch blocks, tail of 8).
    B3, S3, D3 = 24, 16, 64
    x3 = jax.random.normal(jax.random.PRNGKey(1), (B3, S3, D3), jnp.float32)
    mod3 = PositionalEncoding(d_model=D3, max_len=500)
    out3 = jax.block_until_ready(mod3(x3))
    ref3 = x3 + mod3.pe[None, :S3, :]
    assert jnp.allclose(out3, ref3, atol=1e-6, rtol=1e-6)

    assert bool(jnp.all(jnp.isfinite(out)))
    assert bool(jnp.all(jnp.isfinite(out2)))
    assert bool(jnp.all(jnp.isfinite(out3)))
    print("KERNEL_OK")
</pallas_src>

<mosaic_0001>
module attributes {stable_mosaic.version = 11 : i64} {
  func.func @_add_pe_kernel(%arg0: i32, %arg1: i32, %arg2: memref<2x256xf32, #tpu.memory_space<vmem>>, %arg3: memref<1x256xf32, #tpu.memory_space<vmem>>, %arg4: memref<2x256xf32, #tpu.memory_space<vmem>>) attributes {dimension_semantics = [#tpu.dimension_semantics<parallel>, #tpu.dimension_semantics<parallel>], iteration_bounds = array<i64: 1, 1>, scalar_prefetch = 0 : i64, scratch_operands = 0 : i64, tpu.core_type = #tpu.core_type<tc>, window_params = [{transform_indices = @transform_0, window_bounds = array<i64: 2, 256>}, {transform_indices = @transform_1, window_bounds = array<i64: 1, 256>}, {transform_indices = @transform_2, window_bounds = array<i64: 2, 256>}]} {
    %c0 = arith.constant 0 : index
    %c0_0 = arith.constant 0 : index
    %0 = vector.load %arg2[%c0, %c0_0] : memref<2x256xf32, #tpu.memory_space<vmem>>, vector<2x256xf32>
    %c0_1 = arith.constant 0 : index
    %c0_2 = arith.constant 0 : index
    %1 = vector.load %arg3[%c0_1, %c0_2] : memref<1x256xf32, #tpu.memory_space<vmem>>, vector<1x256xf32>
    %2 = vector.broadcast %1 : vector<1x256xf32> to vector<2x256xf32>
    %3 = arith.addf %0, %2 : vector<2x256xf32>
    %c0_3 = arith.constant 0 : index
    %c0_4 = arith.constant 0 : index
    %4 = vector.load %arg4[%c0_3, %c0_4] : memref<2x256xf32, #tpu.memory_space<vmem>>, vector<2x256xf32>
    tpu.vector_store %arg4[%c0_3, %c0_4], %3 {strides = array<i32>} : memref<2x256xf32, #tpu.memory_space<vmem>>, vector<2x256xf32>,
    return
  }
  func.func @transform_0(%arg0: i32, %arg1: i32) -> (i32, i32) {
    %c0_i32 = arith.constant 0 : i32
    return %arg1, %arg0 : i32, i32
  }
  func.func @transform_1(%arg0: i32, %arg1: i32) -> (i32, i32) {
    %c0_i32 = arith.constant 0 : i32
    %c0_i32_0 = arith.constant 0 : i32
    return %c0_i32, %arg0 : i32, i32
  }
  func.func @transform_2(%arg0: i32, %arg1: i32) -> (i32, i32) {
    %c0_i32 = arith.constant 0 : i32
    return %arg1, %arg0 : i32, i32
  }
}

</mosaic_0001>

<llo_original>
// kernel: tpu_custom_call.1
$region0: #{tpu_custom_call.1}
  #allocation0 [shape = 'u32[]', space=smem, size = 0x4, offset = 0x4, fixed_abs, tag = 'smem constant byte address 0x4 - core index']
  #allocation1 [shape = 'u32[144,128]{1,0:T(1,128)}', space=vmem, size = 0x12000, scoped, tag = 'internal scratch']
  %s0 = inlined_call_operand.hbm [shape: f32[2,256], index: 0, kind: input, shape index: {}]
  %s1 = inlined_call_operand.hbm [shape: f32[1,256], index: 1, kind: input, shape index: {}]
  %s2 = inlined_call_operand.hbm [shape: f32[2,256], index: 2, kind: output, shape index: {}]
  %s3 = sld [smem:[#allocation0]]
  $region26: #{tpu_custom_call.1} parent=0
    _
  %s5 = ssub.s32 1, %s3
  %s6 = scalar_select 0, %s5, %s3
  $region1: #{tpu_custom_call.1} parent=0
    #allocation2 [shape = 'u8[2048]{0}', space=vmem, size = 0x800, scoped, tag = 'input window, operand 0, single buffered']
    #allocation3 [shape = 's32[1]{0}', space=sflag, size = 0x4, scoped, tag = 'scoped memory for tpu_custom_call.1']
    #allocation4 [shape = 's32[1]{0}', space=sflag, size = 0x4, scoped, tag = 'scoped memory for tpu_custom_call.1']
    #allocation5 [shape = 'u8[1024]{0}', space=vmem, size = 0x400, scoped, tag = 'input window, operand 1, single buffered']
    #allocation6 [shape = 's32[1]{0}', space=sflag, size = 0x4, scoped, tag = 'scoped memory for tpu_custom_call.1']
    #allocation7 [shape = 'u8[2048]{0}', space=vmem, size = 0x800, scoped, tag = 'output window, operand 0, single buffered']
    %7 = vsyncpa [#allocation3], 0
    %8 = vsyncpa [#allocation6], 0
    %9 = vsyncpa [#allocation4], 0
    // Predicated region
    $region2: #{tpu_custom_call.1} parent=1 // pred_check
      _
    $region3: #{tpu_custom_call.1} parent=1 // pred_check_branch
      %11 = sbr.rel (0) target = $region5
    $region4: #{tpu_custom_call.1} parent=1 // pred_region
      %s13 = ssub.s32 64, 64
      %14 = vsyncadd [#allocation3], %s13
      %s16 = sshll.u32 [#allocation2], 4
      %s17 = int_to_ptr.vmem [resolvable:$true] %s16
      %19 = dma.hbm_to_vmem [thread:$0]  %s0, 64, %s17, [#allocation3]
    $region5: #{tpu_custom_call.1} parent=1 // pred_fallthru
      _
    // Predicated region
    $region6: #{tpu_custom_call.1} parent=1 // pred_check
      _
    $region7: #{tpu_custom_call.1} parent=1 // pred_check_branch
      %21 = sbr.rel (0) target = $region9
    $region8: #{tpu_custom_call.1} parent=1 // pred_region
      %s23 = ssub.s32 32, 32
      %24 = vsyncadd [#allocation6], %s23
      %s26 = sshll.u32 [#allocation5], 4
      %s27 = int_to_ptr.vmem [resolvable:$true] %s26
      %29 = dma.hbm_to_vmem [thread:$0]  %s1, 32, %s27, [#allocation6]
    $region9: #{tpu_custom_call.1} parent=1 // pred_fallthru
      _
    // Predicated region
    $region10: #{tpu_custom_call.1} parent=1 // pred_check
      _
    $region11: #{tpu_custom_call.1} parent=1 // pred_check_branch
      %31 = sbr.rel (0) target = $region13
    $region12: #{tpu_custom_call.1} parent=1 // pred_region
      %32 = dma.done [#allocation3], 64
    $region13: #{tpu_custom_call.1} parent=1 // pred_fallthru
      _
    // Predicated region
    $region14: #{tpu_custom_call.1} parent=1 // pred_check
      _
    $region15: #{tpu_custom_call.1} parent=1 // pred_check_branch
      %34 = sbr.rel (0) target = $region17
    $region16: #{tpu_custom_call.1} parent=1 // pred_region
      %35 = dma.done [#allocation6], 32
    $region17: #{tpu_custom_call.1} parent=1 // pred_fallthru
      _
    %v36 = vld [vmem:[#allocation2] sm:$0xf]
    %v37 = vld [vmem:[#allocation5] sm:$0x3]
    %v39 = vlaneseq
    %v40 = vshrl.u32 %v39, 7
    %v41 = vsub.s32 0, %v40
    %v42 = vrot.slane %v37, %v41
    %v43 = vlaneseq
    %v44 = vshrl.u32 %v43, 7
    %v45 = vsub.s32 1, %v44
    %v46 = vrot.slane %v37, %v45
    %v47 = vcombine.low %v42, %v46
    %v49 = vunpack.c.l.s4 1983009808
    %v50 = vunpack.c.0.s8 %v49
    %v51 = vlaneseq
    %v52 = vshrl.u32 %v51, 7
    %v53 = vsub.s32 %v50, %v52
    %v54 = vrot.slane %v47, %v53
    %v56 = vadd.f32 %v36, %v54
    %57 = vst [vmem:[#allocation7] sm:$0xf] %v56
    // Predicated region
    $region18: #{tpu_custom_call.1} parent=1 // pred_check
      _
    $region19: #{tpu_custom_call.1} parent=1 // pred_check_branch
      %59 = sbr.rel (0) target = $region21
    $region20: #{tpu_custom_call.1} parent=1 // pred_region
      %s61 = ssub.s32 64, 64
      %62 = vsyncadd [#allocation4], %s61
      %s64 = sshll.u32 [#allocation7], 4
      %s65 = int_to_ptr.vmem [resolvable:$true] %s64
      %67 = dma.vmem_to_hbm [thread:$0]  %s65, 64, %s2, [#allocation4]
    $region21: #{tpu_custom_call.1} parent=1 // pred_fallthru
      _
    // Predicated region
    $region22: #{tpu_custom_call.1} parent=1 // pred_check
      _
    $region23: #{tpu_custom_call.1} parent=1 // pred_check_branch
      %69 = sbr.rel (0) target = $region25
    $region24: #{tpu_custom_call.1} parent=1 // pred_region
      %70 = dma.done [#allocation4], 64
    $region25: #{tpu_custom_call.1} parent=1 // pred_fallthru
      _
    %71 = vsyncpa [#allocation3], 1
    %72 = vsyncpa [#allocation6], 1
    %73 = vsyncpa [#allocation4], 1

</llo_original>
